<compile_context>
chip_gen: v7x
topology: tpu7x:2x2x1
jax: 0.10.0
libtpu: 0.0.40
codegen_flags: <defaults>
</compile_context>

<pallas_src>
import functools
import math

import jax
import jax.numpy as jnp
from jax.experimental import pallas as pl
from jax.experimental.pallas import tpu as pltpu


# ----------------------------------------------------------------------------
# Rel-shift helpers
# ----------------------------------------------------------------------------

def _rel_shift_ref(bd):
    """Wrapper-side (XLA) rel-shift on a (B, H, Q, R) tensor; mirrors torch's pad+view."""
    B, H, I, J = bd.shape
    zero_pad = jnp.zeros((B, H, I, 1), bd.dtype)
    padded = jnp.concatenate([zero_pad, bd], axis=-1)
    return padded.reshape(B, H, I * (J + 1))[:, :, I:].reshape(B, H, I, J)


def _rel_shift_2d(x, mask_le, mask_eq1, qn):
    """Exact Transformer-XL rel-shift of a (Q, R) score block (Q == R), done on-chip.

    Two strided lane rotations + one sublane rotation (XLU slots) + masks:
      shifted[i, j] = x[i, R-1+j-i]   for j <= i
                    = 0               for j == i+1
                    = x[i+1, j-i-2]   for j >  i+1   (torch's wrap-around values)
    The index masks are computed once by the caller (hoisted out of the head loop).
    """
    a = pltpu.roll(x, 1, 1, stride=1, stride_axis=0)       # row i rolled right by i+1
    dwn = pltpu.roll(x, qn - 1, 0)                          # row i -> original row i+1
    c = pltpu.roll(dwn, 2, 1, stride=1, stride_axis=0)      # row i rolled right by i+2
    return jnp.where(mask_le, a, jnp.where(mask_eq1, 0.0, c))


@functools.lru_cache(maxsize=None)
def _strided_roll_shift_supported(n):
    """Probe at the actual (Q, R) shape: does the strided-roll rel-shift reproduce
    torch's pad+view shift on this backend?"""
    try:
        x = (jnp.arange(n * n, dtype=jnp.float32).reshape(n, n) + 1.0) / (n * n)

        def kern(x_ref, o_ref):
            i_idx = jax.lax.broadcasted_iota(jnp.int32, (n, n), 0)
            j_idx = jax.lax.broadcasted_iota(jnp.int32, (n, n), 1)
            o_ref[...] = _rel_shift_2d(x_ref[...], j_idx <= i_idx,
                                       j_idx == i_idx + 1, n)

        got = pl.pallas_call(
            kern, out_shape=jax.ShapeDtypeStruct((n, n), jnp.float32))(x)
        want = _rel_shift_ref(x[None, None])[0, 0]
        return bool(jnp.allclose(got, want, atol=1e-6))
    except Exception:
        return False


# ----------------------------------------------------------------------------
# Tiled matmul kernel (qkv_net / r_net projections), bf16 out, f32 accumulate
# ----------------------------------------------------------------------------

def _matmul_kernel(x_ref, w_ref, o_ref, acc_ref):
    @pl.when(pl.program_id(2) == 0)
    def _():
        acc_ref[...] = jnp.zeros_like(acc_ref)

    acc_ref[...] += jnp.dot(x_ref[...], w_ref[...],
                            preferred_element_type=jnp.float32)

    @pl.when(pl.program_id(2) == pl.num_programs(2) - 1)
    def _():
        o_ref[...] = acc_ref[...].astype(o_ref.dtype)


def _fit_tile(dim, tile):
    """(block, padded_dim): full-extent block if dim <= tile, else tile + zero-pad."""
    if dim <= tile:
        return dim, dim
    return tile, dim + (-dim % tile)


def matmul(x, w, *, out_dtype=jnp.bfloat16, tm=512, tn=512, tk=512):
    """x:(M,K) @ w:(K,N) -> (M,N) in out_dtype.  bf16 MXU operands, f32 VMEM accumulator.
    Non-divisible dims are zero-padded to a tile multiple (no giant-block fallback)."""
    m, k = x.shape
    k2, n = w.shape
    assert k == k2
    tm, mp = _fit_tile(m, tm)
    tn, np_ = _fit_tile(n, tn)
    tk, kp = _fit_tile(k, tk)
    if (mp, kp) != (m, k):
        x = jnp.pad(x, ((0, mp - m), (0, kp - k)))
    if (kp, np_) != (k, n):
        w = jnp.pad(w, ((0, kp - k), (0, np_ - n)))
    out = pl.pallas_call(
        _matmul_kernel,
        out_shape=jax.ShapeDtypeStruct((mp, np_), out_dtype),
        grid=(mp // tm, np_ // tn, kp // tk),
        in_specs=[
            pl.BlockSpec((tm, tk), lambda i, j, kk: (i, kk)),
            pl.BlockSpec((tk, tn), lambda i, j, kk: (kk, j)),
        ],
        out_specs=pl.BlockSpec((tm, tn), lambda i, j, kk: (i, j)),
        scratch_shapes=[pltpu.VMEM((tm, tn), jnp.float32)],
        compiler_params=pltpu.CompilerParams(
            dimension_semantics=("parallel", "parallel", "arbitrary")),
    )(x, w)
    if (mp, np_) != (m, n):
        out = out[:m, :n]
    return out


# ----------------------------------------------------------------------------
# Fused relative attention + single o-projection + residual + LayerNorm
# ----------------------------------------------------------------------------

def _fused_attn_kernel(x_ref, qkv_ref, pos_ref, rwb_ref, rrb_ref, wo_ref,
                       g_ref, b_ref, o_ref, av_ref, *,
                       scale, eps, n_head, d_head, shift_in_kernel):
    H, D = n_head, d_head
    Q = qkv_ref.shape[3]
    dn = (((1,), (1,)), ((), ()))          # contract the last (d_head) dim of both operands

    if shift_in_kernel:                    # rel-shift masks hoisted out of the head loop
        i_idx = jax.lax.broadcasted_iota(jnp.int32, (Q, Q), 0)
        j_idx = jax.lax.broadcasted_iota(jnp.int32, (Q, Q), 1)
        mask_le = j_idx <= i_idx
        mask_eq1 = j_idx == i_idx + 1

    # Per-head scores/softmax/AV; av collected into the VMEM scratch each iteration so
    # per-head temporaries do not stay live across heads.
    # TODO(synk): batch heads in the score/AV dots (d_head < 128 lanes is lane-sparse).
    for h in range(H):
        q_h = qkv_ref[0, 0, h]             # (Q, D) bf16
        k_h = qkv_ref[0, 1, h]             # (K, D) bf16
        v_h = qkv_ref[0, 2, h]             # (K, D) bf16

        ac = jax.lax.dot_general(q_h + rwb_ref[h], k_h, dn,
                                 preferred_element_type=jnp.float32)       # (Q, K) f32
        if shift_in_kernel:
            bd = jax.lax.dot_general(q_h + rrb_ref[h], pos_ref[h], dn,
                                     preferred_element_type=jnp.float32)   # (Q, R) f32
            bd = _rel_shift_2d(bd, mask_le, mask_eq1, Q)
        else:
            bd = pos_ref[0, h].astype(jnp.float32)                         # pre-shifted BD

        s = (ac + bd) * scale
        m = jnp.max(s, axis=-1, keepdims=True)
        e = jnp.exp(s - m)
        l = jnp.sum(e, axis=-1, keepdims=True)
        p = (e * pl.reciprocal(l, approx=True)).astype(v_h.dtype)          # bf16 probs
        av = jnp.dot(p, v_h, preferred_element_type=jnp.float32)           # (Q, D) f32
        av_ref[:, h * D:(h + 1) * D] = av.astype(av_ref.dtype)

    # ONE o_net matmul (full H*D = d_model-deep MXU contraction), then residual +
    # post-LayerNorm (f32), written lane-dense as (Q, d_model).
    attn_out = jnp.dot(av_ref[...], wo_ref[...], preferred_element_type=jnp.float32)
    y = x_ref[0] + attn_out
    mu = jnp.mean(y, axis=-1, keepdims=True)
    var = jnp.mean(jnp.square(y - mu), axis=-1, keepdims=True)
    o_ref[0] = (y - mu) * jax.lax.rsqrt(var + eps) * g_ref[...] + b_ref[...]


def fused_rel_attention(x_bq, qkv, pos, rwb, rrb, wo, ln_g, ln_b,
                        *, n_head, d_head, scale, eps, shift_in_kernel):
    B, _, H, Q, D = qkv.shape
    DM = x_bq.shape[-1]
    R = pos.shape[1] if shift_in_kernel else pos.shape[-1]

    if shift_in_kernel:
        pos_spec = pl.BlockSpec((H, R, D), lambda b: (0, 0, 0))          # r_head_k resident
    else:
        pos_spec = pl.BlockSpec((1, H, Q, R), lambda b: (b, 0, 0, 0))    # pre-shifted BD bf16

    # TODO(synk): for long sequences tile Q (second 'parallel' grid axis -> v7x megacore)
    # and K with an online-softmax accumulator; the in-kernel rel-shift then needs a
    # one-row BD halo across Q tiles.  Heads could also move to an 'arbitrary' grid axis.
    return pl.pallas_call(
        functools.partial(_fused_attn_kernel, scale=scale, eps=eps,
                          n_head=n_head, d_head=d_head,
                          shift_in_kernel=shift_in_kernel),
        out_shape=jax.ShapeDtypeStruct((B, Q, DM), jnp.float32),
        grid=(B,),
        in_specs=[
            pl.BlockSpec((1, Q, DM), lambda b: (b, 0, 0)),                # residual (f32)
            pl.BlockSpec((1, 3, H, Q, D), lambda b: (b, 0, 0, 0, 0)),     # packed qkv (bf16)
            pos_spec,                                                     # r_k or shifted BD
            pl.BlockSpec((H, 1, D), lambda b: (0, 0, 0)),                 # r_w_bias (resident)
            pl.BlockSpec((H, 1, D), lambda b: (0, 0, 0)),                 # r_r_bias (resident)
            pl.BlockSpec((H * D, DM), lambda b: (0, 0)),                  # o_net W (resident)
            pl.BlockSpec((1, DM), lambda b: (0, 0)),                      # LN gamma
            pl.BlockSpec((1, DM), lambda b: (0, 0)),                      # LN beta
        ],
        out_specs=pl.BlockSpec((1, Q, DM), lambda b: (b, 0, 0)),
        scratch_shapes=[pltpu.VMEM((Q, H * D), jnp.bfloat16)],            # per-head av slab
        compiler_params=pltpu.CompilerParams(
            dimension_semantics=("parallel",)),
    )(x_bq, qkv, pos, rwb, rrb, wo, ln_g.reshape(1, -1), ln_b.reshape(1, -1))


# ----------------------------------------------------------------------------
# PositionwiseFF + residual + LayerNorm (row-tiled, resident weights)
# ----------------------------------------------------------------------------

def _ff_ln_kernel(x_ref, w1_ref, b1_ref, w2_ref, b2_ref, g_ref, b_ref, o_ref, *, eps):
    x = x_ref[...]                                   # (tr, dm) f32
    w1 = w1_ref[...]                                 # (dm, di) bf16
    w2 = w2_ref[...]                                 # (di, dm) bf16
    h = jnp.dot(x.astype(w1.dtype), w1, preferred_element_type=jnp.float32) + b1_ref[...]
    h = jnp.maximum(h, 0.0)
    core = jnp.dot(h.astype(w2.dtype), w2, preferred_element_type=jnp.float32) + b2_ref[...]
    y = x + core
    mu = jnp.mean(y, axis=-1, keepdims=True)
    var = jnp.mean(jnp.square(y - mu), axis=-1, keepdims=True)
    o_ref[...] = (y - mu) * jax.lax.rsqrt(var + eps) * g_ref[...] + b_ref[...]


def positionwise_ff(x2d, w1T, b1, w2T, b2, gamma, beta, *, eps, row_tile=512):
    rows, dm = x2d.shape
    di = w1T.shape[1]
    tr, rows_p = _fit_tile(rows, row_tile)
    x_p = x2d if rows_p == rows else jnp.pad(x2d, ((0, rows_p - rows), (0, 0)))
    out = pl.pallas_call(
        functools.partial(_ff_ln_kernel, eps=eps),
        out_shape=jax.ShapeDtypeStruct((rows_p, dm), jnp.float32),
        grid=(rows_p // tr,),
        in_specs=[
            pl.BlockSpec((tr, dm), lambda i: (i, 0)),
            pl.BlockSpec((dm, di), lambda i: (0, 0)),   # W1 resident (bf16)
            pl.BlockSpec((1, di), lambda i: (0, 0)),
            pl.BlockSpec((di, dm), lambda i: (0, 0)),   # W2 resident (bf16)
            pl.BlockSpec((1, dm), lambda i: (0, 0)),
            pl.BlockSpec((1, dm), lambda i: (0, 0)),
            pl.BlockSpec((1, dm), lambda i: (0, 0)),
        ],
        out_specs=pl.BlockSpec((tr, dm), lambda i: (i, 0)),
        compiler_params=pltpu.CompilerParams(dimension_semantics=("parallel",)),
    )(x_p, w1T, b1, w2T, b2, gamma, beta)
    return out if rows_p == rows else out[:rows]


# ----------------------------------------------------------------------------
# Decoder-layer forward (Pallas path)
# ----------------------------------------------------------------------------

def rel_partial_decoder_layer(dec_inp, r, params, *, n_head, d_head, eps=1e-5,
                              shift_in_kernel=None):
    """Forward of RelPartialLearnableDecoderLayer (post-lnorm, no mems/mask, eval mode)."""
    qlen, bsz, d_model = dec_inp.shape
    rlen = r.shape[0]
    # TODO(synk): mems / dec_attn_mask / head_mask branches not implemented (the default
    # forward passes None); the no-mems path requires rlen == klen == qlen.
    assert rlen == qlen, "no-mems path requires rlen == qlen"
    H, D = n_head, d_head
    scale = 1.0 / math.sqrt(d_head)
    cdt = jnp.bfloat16

    if shift_in_kernel is None:
        shift_in_kernel = _strided_roll_shift_supported(qlen)

    # batch-major activations (lane-dense d_model last)
    x_bq = dec_inp.transpose(1, 0, 2)                                   # (B, Q, dm) f32
    x2d = x_bq.reshape(bsz * qlen, d_model)

    # qkv_net / r_net projections (tiled Pallas matmuls, bf16 in/out, f32 accumulate)
    w_heads = matmul(x2d.astype(cdt), params["w_qkv"].T.astype(cdt))    # (B*Q, 3*H*D) bf16
    r_head_k = matmul(r.astype(cdt), params["w_r"].T.astype(cdt))       # (R, H*D)     bf16

    # Single fused rearrangement so the attention kernel indexes heads on outer dims only.
    # TODO(synk): fold head-major layout into the projection's out_specs to drop this pass.
    qkv = w_heads.reshape(bsz, qlen, 3, H, D).transpose(0, 2, 3, 1, 4)  # (B,3,H,Q,D) bf16
    rk = r_head_k.reshape(rlen, H, D).transpose(1, 0, 2)                # (H, R, D)   bf16

    rwb = params["r_w_bias"].reshape(H, 1, D).astype(cdt)
    rrb = params["r_r_bias"].reshape(H, 1, D).astype(cdt)
    wo = params["w_o"].T.astype(cdt)                                    # (H*D, dm)   bf16

    if shift_in_kernel:
        pos = rk                                                        # shift done on-chip
    else:
        # Fallback (only if the strided-roll probe failed): shift in XLA, pass BD as bf16.
        q_f32 = qkv[:, 0].astype(jnp.float32)                           # (B, H, Q, D)
        bd = jnp.einsum("bhqd,hrd->bhqr",
                        q_f32 + params["r_r_bias"].reshape(1, H, 1, D),
                        rk.astype(jnp.float32))
        pos = _rel_shift_ref(bd).astype(cdt)                            # (B, H, Q, R) bf16

    out1 = fused_rel_attention(
        x_bq, qkv, pos, rwb, rrb, wo, params["ln1_g"], params["ln1_b"],
        n_head=H, d_head=D, scale=scale, eps=eps,
        shift_in_kernel=shift_in_kernel)                                # (B, Q, dm) f32

    out2 = positionwise_ff(
        out1.reshape(bsz * qlen, d_model),
        params["w_ff1"].T.astype(cdt), params["b_ff1"].reshape(1, -1),
        params["w_ff2"].T.astype(cdt), params["b_ff2"].reshape(1, -1),
        params["ln2_g"].reshape(1, -1), params["ln2_b"].reshape(1, -1), eps=eps)

    return out2.reshape(bsz, qlen, d_model).transpose(1, 0, 2)          # (Q, B, dm)


# ----------------------------------------------------------------------------
# Pure-JAX reference (mirrors the PyTorch code line by line) for verification
# ----------------------------------------------------------------------------

def _layer_norm_ref(x, g, b, eps):
    mu = jnp.mean(x, axis=-1, keepdims=True)
    var = jnp.mean(jnp.square(x - mu), axis=-1, keepdims=True)
    return (x - mu) * jax.lax.rsqrt(var + eps) * g + b


def reference_forward(dec_inp, r, params, *, n_head, d_head, eps=1e-5):
    qlen, bsz, d_model = dec_inp.shape
    rlen = r.shape[0]
    scale = 1.0 / math.sqrt(d_head)

    w_heads = dec_inp @ params["w_qkv"].T
    r_head_k = r @ params["w_r"].T
    w_head_q, w_head_k, w_head_v = jnp.split(w_heads, 3, axis=-1)
    klen = w_head_k.shape[0]

    w_head_q = w_head_q.reshape(qlen, bsz, n_head, d_head)
    w_head_k = w_head_k.reshape(klen, bsz, n_head, d_head)
    w_head_v = w_head_v.reshape(klen, bsz, n_head, d_head)
    r_head_k = r_head_k.reshape(rlen, n_head, d_head)

    rw_head_q = w_head_q + params["r_w_bias"]
    AC = jnp.einsum("ibnd,jbnd->ijbn", rw_head_q, w_head_k)
    rr_head_q = w_head_q + params["r_r_bias"]
    BD = jnp.einsum("ibnd,jnd->ijbn", rr_head_q, r_head_k)

    zero_pad = jnp.zeros((BD.shape[0], 1) + BD.shape[2:], BD.dtype)
    x_padded = jnp.concatenate([zero_pad, BD], axis=1)
    x_padded = x_padded.reshape((BD.shape[1] + 1, BD.shape[0]) + BD.shape[2:])
    BD = x_padded[1:].reshape(BD.shape)

    attn_score = (AC + BD) * scale
    attn_prob = jax.nn.softmax(attn_score, axis=1)
    attn_vec = jnp.einsum("ijbn,jbnd->ibnd", attn_prob, w_head_v)
    attn_vec = attn_vec.reshape(qlen, bsz, n_head * d_head)
    attn_out = attn_vec @ params["w_o"].T
    out1 = _layer_norm_ref(dec_inp + attn_out, params["ln1_g"], params["ln1_b"], eps)

    core = jnp.maximum(out1 @ params["w_ff1"].T + params["b_ff1"], 0.0) @ params["w_ff2"].T + params["b_ff2"]
    return _layer_norm_ref(out1 + core, params["ln2_g"], params["ln2_b"], eps)


# ----------------------------------------------------------------------------
# Main
# ----------------------------------------------------------------------------

if __name__ == "__main__":
    n_head, d_model, d_head, d_inner = 2, 32, 8, 64
    qlen, bsz, rlen = 8, 2, 8

    key = jax.random.PRNGKey(0)
    ks = jax.random.split(key, 12)

    def init(k, shape, s=0.02):
        return (s * jax.random.normal(k, shape)).astype(jnp.float32)

    params = {
        "w_qkv": init(ks[0], (3 * n_head * d_head, d_model)),
        "w_r": init(ks[1], (n_head * d_head, d_model)),
        "w_o": init(ks[2], (d_model, n_head * d_head)),
        "r_w_bias": init(ks[3], (n_head, d_head)),
        "r_r_bias": init(ks[4], (n_head, d_head)),
        "ln1_g": jnp.ones((d_model,), jnp.float32),
        "ln1_b": jnp.zeros((d_model,), jnp.float32),
        "w_ff1": init(ks[5], (d_inner, d_model)),
        "b_ff1": init(ks[6], (d_inner,)),
        "w_ff2": init(ks[7], (d_model, d_inner)),
        "b_ff2": init(ks[8], (d_model,)),
        "ln2_g": jnp.ones((d_model,), jnp.float32),
        "ln2_b": jnp.zeros((d_model,), jnp.float32),
    }

    dec_inp = jax.random.normal(ks[9], (qlen, bsz, d_model), jnp.float32)
    r = jax.random.normal(ks[10], (rlen, d_model), jnp.float32)

    out = rel_partial_decoder_layer(dec_inp, r, params, n_head=n_head, d_head=d_head)
    out = jax.block_until_ready(out)

    ref = reference_forward(dec_inp, r, params, n_head=n_head, d_head=d_head)
    assert out.shape == (qlen, bsz, d_model)
    assert jnp.allclose(out, ref, atol=2e-2, rtol=2e-2), "mismatch vs pure-JAX reference"

    print("KERNEL_OK")
</pallas_src>

<mosaic_0001>
module attributes {stable_mosaic.version = 11 : i64} {
  func.func @kern(%arg0: memref<8x8xf32, #tpu.memory_space<vmem>>, %arg1: memref<8x8xf32, #tpu.memory_space<vmem>>) attributes {dimension_semantics = [], scalar_prefetch = 0 : i64, scratch_operands = 0 : i64, tpu.core_type = #tpu.core_type<tc>} {
    %0 = tpu.iota {dimensions = array<i32: 0>} : vector<8x8xi32>
    %1 = tpu.iota {dimensions = array<i32: 1>} : vector<8x8xi32>
    %c0 = arith.constant 0 : index
    %c0_0 = arith.constant 0 : index
    %2 = vector.load %arg0[%c0, %c0_0] : memref<8x8xf32, #tpu.memory_space<vmem>>, vector<8x8xf32>
    %3 = arith.cmpi sle, %1, %0 : vector<8x8xi32>
    %c1_i32 = arith.constant 1 : i32
    %4 = vector.broadcast %c1_i32 : i32 to vector<8x8xi32>
    %5 = arith.addi %0, %4 : vector<8x8xi32>
    %6 = arith.cmpi eq, %1, %5 : vector<8x8xi32>
    %c1_i32_1 = arith.constant 1 : i32
    %7 = tpu.dynamic_rotate %2 by %c1_i32_1 dim 1 {stride = 1 : si32, stride_dimension = 0 : si32} : vector<8x8xf32>, i32 -> vector<8x8xf32>
    %c7_i32 = arith.constant 7 : i32
    %8 = tpu.dynamic_rotate %2 by %c7_i32 dim 0 : vector<8x8xf32>, i32 -> vector<8x8xf32>
    %c2_i32 = arith.constant 2 : i32
    %9 = tpu.dynamic_rotate %8 by %c2_i32 dim 1 {stride = 1 : si32, stride_dimension = 0 : si32} : vector<8x8xf32>, i32 -> vector<8x8xf32>
    %cst = arith.constant 0.000000e+00 : f32
    %10 = vector.broadcast %cst : f32 to vector<8x8xf32>
    %11 = arith.select %6, %10, %9 : vector<8x8xi1>, vector<8x8xf32>
    %12 = arith.select %3, %7, %11 : vector<8x8xi1>, vector<8x8xf32>
    %c0_2 = arith.constant 0 : index
    %c0_3 = arith.constant 0 : index
    %13 = vector.load %arg1[%c0_2, %c0_3] : memref<8x8xf32, #tpu.memory_space<vmem>>, vector<8x8xf32>
    tpu.vector_store %arg1[%c0_2, %c0_3], %12 {strides = array<i32>} : memref<8x8xf32, #tpu.memory_space<vmem>>, vector<8x8xf32>,
    return
  }
}

module attributes {stable_mosaic.version = 11 : i64} {
  func.func @_matmul_kernel(%arg0: i32, %arg1: i32, %arg2: i32, %arg3: memref<16x32xbf16, #tpu.memory_space<vmem>>, %arg4: memref<32x48xbf16, #tpu.memory_space<vmem>>, %arg5: memref<16x48xbf16, #tpu.memory_space<vmem>>, %arg6: memref<16x48xf32, #tpu.memory_space<vmem>>) attributes {dimension_semantics = [#tpu.dimension_semantics<parallel>, #tpu.dimension_semantics<parallel>, #tpu.dimension_semantics<arbitrary>], iteration_bounds = array<i64: 1, 1, 1>, scalar_prefetch = 0 : i64, scratch_operands = 1 : i64, tpu.core_type = #tpu.core_type<tc>, window_params = [{transform_indices = @transform_0, window_bounds = array<i64: 16, 32>}, {transform_indices = @transform_1, window_bounds = array<i64: 32, 48>}, {transform_indices = @transform_2, window_bounds = array<i64: 16, 48>}]} {
    %c0_i32 = arith.constant 0 : i32
    %0 = arith.cmpi eq, %arg2, %c0_i32 : i32
    %1 = arith.extui %0 : i1 to i32
    %c0_i32_0 = arith.constant 0 : i32
    %2 = arith.cmpi ne, %1, %c0_i32_0 : i32
    scf.if %2 {
      %cst_10 = arith.constant 0.000000e+00 : f32
      %12 = vector.broadcast %cst_10 : f32 to vector<16x48xf32>
      %c0_11 = arith.constant 0 : index
      %c0_12 = arith.constant 0 : index
      %13 = vector.load %arg6[%c0_11, %c0_12] : memref<16x48xf32, #tpu.memory_space<vmem>>, vector<16x48xf32>
      tpu.vector_store %arg6[%c0_11, %c0_12], %12 {strides = array<i32>} : memref<16x48xf32, #tpu.memory_space<vmem>>, vector<16x48xf32>,
    } else {
    }
    %c0 = arith.constant 0 : index
    %c0_1 = arith.constant 0 : index
    %3 = vector.load %arg6[%c0, %c0_1] : memref<16x48xf32, #tpu.memory_space<vmem>>, vector<16x48xf32>
    %c0_2 = arith.constant 0 : index
    %c0_3 = arith.constant 0 : index
    %4 = vector.load %arg3[%c0_2, %c0_3] : memref<16x32xbf16, #tpu.memory_space<vmem>>, vector<16x32xbf16>
    %c0_4 = arith.constant 0 : index
    %c0_5 = arith.constant 0 : index
    %5 = vector.load %arg4[%c0_4, %c0_5] : memref<32x48xbf16, #tpu.memory_space<vmem>>, vector<32x48xbf16>
    %cst = arith.constant dense<0.000000e+00> : vector<16x48xf32>
    %6 = tpu.matmul %4, %5, %cst {dimension_numbers = #tpu.dot_dimension_numbers<[1], [0], [0], [1], [0, 0, 1, 1], [], []>} : vector<16x32xbf16>, vector<32x48xbf16>, vector<16x48xf32> -> vector<16x48xf32>
    %7 = arith.addf %3, %6 : vector<16x48xf32>
    %c0_6 = arith.constant 0 : index
    %c0_7 = arith.constant 0 : index
    %8 = vector.load %arg6[%c0_6, %c0_7] : memref<16x48xf32, #tpu.memory_space<vmem>>, vector<16x48xf32>
    tpu.vector_store %arg6[%c0_6, %c0_7], %7 {strides = array<i32>} : memref<16x48xf32, #tpu.memory_space<vmem>>, vector<16x48xf32>,
    %c0_i32_8 = arith.constant 0 : i32
    %9 = arith.cmpi eq, %arg2, %c0_i32_8 : i32
    %10 = arith.extui %9 : i1 to i32
    %c0_i32_9 = arith.constant 0 : i32
    %11 = arith.cmpi ne, %10, %c0_i32_9 : i32
    scf.if %11 {
      %c0_10 = arith.constant 0 : index
      %c0_11 = arith.constant 0 : index
      %12 = vector.load %arg6[%c0_10, %c0_11] : memref<16x48xf32, #tpu.memory_space<vmem>>, vector<16x48xf32>
      %13 = arith.truncf %12 : vector<16x48xf32> to vector<16x48xbf16>
      %c0_12 = arith.constant 0 : index
      %c0_13 = arith.constant 0 : index
      %14 = vector.load %arg5[%c0_12, %c0_13] : memref<16x48xbf16, #tpu.memory_space<vmem>>, vector<16x48xbf16>
      tpu.vector_store %arg5[%c0_12, %c0_13], %13 {strides = array<i32>} : memref<16x48xbf16, #tpu.memory_space<vmem>>, vector<16x48xbf16>,
    } else {
    }
    return
  }
  func.func @transform_0(%arg0: i32, %arg1: i32, %arg2: i32) -> (i32, i32) {
    %c0_i32 = arith.constant 0 : i32
    return %arg0, %arg2 : i32, i32
  }
  func.func @transform_1(%arg0: i32, %arg1: i32, %arg2: i32) -> (i32, i32) {
    %c0_i32 = arith.constant 0 : i32
    return %arg2, %arg1 : i32, i32
  }
  func.func @transform_2(%arg0: i32, %arg1: i32, %arg2: i32) -> (i32, i32) {
    %c0_i32 = arith.constant 0 : i32
    return %arg0, %arg1 : i32, i32
  }
}

</mosaic_0001>

<llo_original>
// kernel: tpu_custom_call.1
$region0: #{tpu_custom_call.1}
  #allocation0 [shape = 'u32[]', space=smem, size = 0x4, offset = 0x4, fixed_abs, tag = 'smem constant byte address 0x4 - core index']
  #allocation1 [shape = 'u32[144,128]{1,0:T(1,128)}', space=vmem, size = 0x12000, scoped, tag = 'internal scratch']
  #allocation2 [shape = 'f32[16,48]{1,0:T(8,128)}', space=vmem, size = 0x2000, scoped, tag = 'scratch operand']
  %s0 = inlined_call_operand.hbm [shape: bf16[16,32], index: 0, kind: input, shape index: {}]
  %s1 = inlined_call_operand.hbm [shape: bf16[32,48], index: 1, kind: input, shape index: {}]
  %s2 = inlined_call_operand.hbm [shape: bf16[16,48], index: 2, kind: output, shape index: {}]
  %s3 = sld [smem:[#allocation0]]
  $region34: #{tpu_custom_call.1} parent=0
    _
  %s5 = ssub.s32 1, %s3
  %s6 = scalar_select 0, %s5, %s3
  $region1: #{tpu_custom_call.1} parent=0
    #allocation3 [shape = 'u8[4096]{0}', space=vmem, size = 0x1000, scoped, tag = 'input window, operand 0, single buffered']
    #allocation4 [shape = 's32[1]{0}', space=sflag, size = 0x4, scoped, tag = 'scoped memory for tpu_custom_call.1']
    #allocation5 [shape = 's32[1]{0}', space=sflag, size = 0x4, scoped, tag = 'scoped memory for tpu_custom_call.1']
    #allocation6 [shape = 'u8[8192]{0}', space=vmem, size = 0x2000, scoped, tag = 'input window, operand 1, single buffered']
    #allocation7 [shape = 's32[1]{0}', space=sflag, size = 0x4, scoped, tag = 'scoped memory for tpu_custom_call.1']
    #allocation8 [shape = 'u8[4096]{0}', space=vmem, size = 0x1000, scoped, tag = 'output window, operand 0, single buffered']
    %7 = vsyncpa [#allocation4], 0
    %8 = vsyncpa [#allocation7], 0
    %9 = vsyncpa [#allocation5], 0
    // Predicated region
    $region2: #{tpu_custom_call.1} parent=1 // pred_check
      _
    $region3: #{tpu_custom_call.1} parent=1 // pred_check_branch
      %11 = sbr.rel (0) target = $region5
    $region4: #{tpu_custom_call.1} parent=1 // pred_region
      %s13 = ssub.s32 128, 128
      %14 = vsyncadd [#allocation4], %s13
      %s15 = sshll.u32 [#allocation3], 4
      %s16 = int_to_ptr.vmem [resolvable:$true] %s15
      %21 = dma.hbm_to_vmem [thread:$0]  %s0, 128, %s16, [#allocation4], 64, 64, 4
    $region5: #{tpu_custom_call.1} parent=1 // pred_fallthru
      _
    // Predicated region
    $region6: #{tpu_custom_call.1} parent=1 // pred_check
      _
    $region7: #{tpu_custom_call.1} parent=1 // pred_check_branch
      %23 = sbr.rel (0) target = $region9
    $region8: #{tpu_custom_call.1} parent=1 // pred_region
      %s25 = ssub.s32 256, 256
      %26 = vsyncadd [#allocation7], %s25
      %s27 = sshll.u32 [#allocation6], 4
      %s28 = int_to_ptr.vmem [resolvable:$true] %s27
      %33 = dma.hbm_to_vmem [thread:$0]  %s1, 256, %s28, [#allocation7], 64, 64, 4
    $region9: #{tpu_custom_call.1} parent=1 // pred_fallthru
      _
    // Predicated region
    $region10: #{tpu_custom_call.1} parent=1 // pred_check
      _
    $region11: #{tpu_custom_call.1} parent=1 // pred_check_branch
      %35 = sbr.rel (0) target = $region13
    $region12: #{tpu_custom_call.1} parent=1 // pred_region
      %36 = dma.done [#allocation4], 128
    $region13: #{tpu_custom_call.1} parent=1 // pred_fallthru
      _
    // Predicated region
    $region14: #{tpu_custom_call.1} parent=1 // pred_check
      _
    $region15: #{tpu_custom_call.1} parent=1 // pred_check_branch
      %38 = sbr.rel (0) target = $region17
    $region16: #{tpu_custom_call.1} parent=1 // pred_region
      %39 = dma.done [#allocation7], 256
    $region17: #{tpu_custom_call.1} parent=1 // pred_fallthru
      _
    %p41 = scmp.eq.s32.totalorder 0, 0
    // Predicated region
    $region18: #{tpu_custom_call.1} parent=1 // pred_check
      %p42 = pneg %p41
    $region19: #{tpu_custom_call.1} parent=1 // pred_check_branch
      %44 = sbr.rel (%p42) target = $region21
    $region20: #{tpu_custom_call.1} parent=1 // pred_region
      %vm45 = vcmask 392192
      %46 = vst.msk [vmem:[#allocation2] sm:$0xff] %vm45, 0.0
      %47 = vst.msk [vmem:[#allocation2 + $0x8] sm:$0xff] %vm45, 0.0
    $region21: #{tpu_custom_call.1} parent=1 // pred_fallthru
      _
    %v48 = vld [vmem:[#allocation2] sm:$0xff]
    %v49 = vld [vmem:[#allocation2 + $0x8] sm:$0xff]
    %v50 = vld [vmem:[#allocation3] sm:$0xf]
    %v51 = vld [vmem:[#allocation3 + $0x4] sm:$0xf]
    %v52 = vld [vmem:[#allocation6] sm:$0xf]
    %v53 = vld [vmem:[#allocation6 + $0x4] sm:$0xf]
    %v54 = vld [vmem:[#allocation6 + $0x8] sm:$0xf]
    %v55 = vld [vmem:[#allocation6 + $0xc] sm:$0xf]
    %v58 = vunpack.c.l.b16 %v50
    %v59 = vunpack.c.l.b16 %v51
    %v60 = vpack.c.b16 %v59, %v58
    %v65 = vunpack.c.l.b16 %v52
    %v66 = vunpack.c.l.b16 %v53
    %v67 = vunpack.c.l.b16 %v54
    %v68 = vunpack.c.l.b16 %v55
    %v69 = vpack.c.b16 %v66, %v65
    %v70 = vpack.c.b16 %v68, %v67
    %vm73 = vcmask 261120
    %v75 = vsel %vm73, %v60, 0
    %77 = vmatprep.subr.bf16.mxu0 0
    %78 = vmatpush1.bf16.msra.mxu0 %v69
    %79 = vmatprep.subr.bf16.mxu0 0
    %80 = vmatpush1.bf16.msra.mxu0 %v70
    %81 = vmatprep.subr.bf16.mxu0 0
    %82 = vmatpush1.bf16.msra.mxu0 0
    %83 = vmatprep.subr.bf16.mxu0 0
    %84 = vmatpush1.bf16.msra.mxu0 0
    %85 = vmatprep.subr.bf16.mxu0 0
    %86 = vmatpush1.bf16.msra.mxu0 0
    %87 = vmatprep.subr.bf16.mxu0 0
    %88 = vmatpush1.bf16.msra.mxu0 0
    %89 = vmatprep.subr.bf16.mxu0 0
    %90 = vmatpush1.bf16.msra.mxu0 0
    %91 = vmatprep.subr.bf16.mxu0 0
    %92 = vmatpush1.bf16.msra.mxu0 0
    %93 = vmatprep.subr.bf16.mxu0 0
    %94 = vmatpush1.bf16.msra.mxu0 0
    %95 = vmatprep.subr.bf16.mxu0 0
    %96 = vmatpush1.bf16.msra.mxu0 0
    %97 = vmatprep.subr.bf16.mxu0 0
    %98 = vmatpush1.bf16.msra.mxu0 0
    %99 = vmatprep.subr.bf16.mxu0 0
    %100 = vmatpush1.bf16.msra.mxu0 0
    %101 = vmatprep.subr.bf16.mxu0 0
    %102 = vmatpush1.bf16.msra.mxu0 0
    %103 = vmatprep.subr.bf16.mxu0 0
    %104 = vmatpush1.bf16.msra.mxu0 0
    %105 = vmatprep.subr.bf16.mxu0 0
    %106 = vmatpush1.bf16.msra.mxu0 0
    %107 = vmatprep.subr.bf16.mxu0 0
    %108 = vmatpush1.bf16.msra.mxu0 0
    %109 = vmatprep.mubr.bf16.mxu0 0
    %110 = vmatmul.mubr.bf16.gmra.mrb[0].mxu0 %v75
    %v111 = vpop.f32.mrb[0].mxu0
    %v112 = vadd.f32 0.0, %v111
    %v113 = vpop.f32.mrb[0].mxu0
    %v114 = vpop.f32.mrb[0].mxu0
    %v115 = vadd.f32 0.0, %v114
    %v116 = vpop.f32.mrb[0].mxu0
    %117 = vdwg.mxu0
    %v118 = vadd.f32 %v48, %v112
    %v119 = vadd.f32 %v49, %v115
    %vm120 = vcmask 392192
    %121 = vst.msk [vmem:[#allocation2] sm:$0xff] %vm120, %v118
    %122 = vst.msk [vmem:[#allocation2 + $0x8] sm:$0xff] %vm120, %v119
    // Predicated region
    $region22: #{tpu_custom_call.1} parent=1 // pred_check
      %p123 = pneg %p41
    $region23: #{tpu_custom_call.1} parent=1 // pred_check_branch
      %125 = sbr.rel (%p123) target = $region25
    $region24: #{tpu_custom_call.1} parent=1 // pred_region
      %v126 = vld [vmem:[#allocation2] sm:$0xff]
      %v127 = vld [vmem:[#allocation2 + $0x8] sm:$0xff]
      %v128 = vpack.c.bf16 %v127, %v126
      %v130 = vunpack.c.l.b16 %v128
      %v131 = vunpack.c.h.b16 %v128
      %v132 = vpack.c.b16 %v130, %v130
      %v133 = vpack.c.b16 %v131, %v131
      %vm136 = vcmask 388096
      %137 = vst.msk [vmem:[#allocation8] sm:$0xf] %vm136, %v132
      %138 = vst.msk [vmem:[#allocation8 + $0x4] sm:$0xf] %vm136, %v133
    $region25: #{tpu_custom_call.1} parent=1 // pred_fallthru
      _
    // Predicated region
    $region26: #{tpu_custom_call.1} parent=1 // pred_check
      _
    $region27: #{tpu_custom_call.1} parent=1 // pred_check_branch
      %140 = sbr.rel (0) target = $region29
    $region28: #{tpu_custom_call.1} parent=1 // pred_region
      %s142 = ssub.s32 128, 128
      %143 = vsyncadd [#allocation5], %s142
      %s144 = sshll.u32 [#allocation8], 4
      %s145 = int_to_ptr.vmem [resolvable:$true] %s144
      %150 = dma.vmem_to_hbm [thread:$0]  %s145, 128, %s2, [#allocation5], 64, 64, 4
    $region29: #{tpu_custom_call.1} parent=1 // pred_fallthru
      _
    // Predicated region
    $region30: #{tpu_custom_call.1} parent=1 // pred_check
      _
    $region31: #{tpu_custom_call.1} parent=1 // pred_check_branch
      %152 = sbr.rel (0) target = $region33
    $region32: #{tpu_custom_call.1} parent=1 // pred_region
      %153 = dma.done [#allocation5], 128
    $region33: #{tpu_custom_call.1} parent=1 // pred_fallthru
      _
    %154 = vsyncpa [#allocation4], 1
    %155 = vsyncpa [#allocation7], 1
    %156 = vsyncpa [#allocation5], 1

</llo_original>
